<compile_context>
chip_gen: v6e
topology: v6e:2x2x1
jax: 0.10.0
libtpu: 0.0.40
codegen_flags: <defaults>
</compile_context>

<pallas_src>
import functools

import jax
import jax.numpy as jnp
from jax.experimental import pallas as pl
from jax.experimental.pallas import tpu as pltpu


def _critic_kernel(s_ref, a_ref, w1s_ref, w1ab_ref, w2_ref, b2_ref, w3_ref,
                   b3_ref, o_ref, *, bf16_elementwise):
    # s_ref    (tb, S)   f32    a_ref    (tb, A)    f32
    # w1s_ref  (S, H1)   bf16   w1ab_ref (A+1, H1)  bf16 (b1 folded as last row)
    # w2_ref   (H1, H2)  bf16   b2_ref   (1, H2)    f32
    # w3_ref   (1, H2)   f32    b3_ref   (1, 1)     f32  (SMEM scalar)
    # o_ref    (1, tb)   f32    lane-dense output row
    tb = s_ref.shape[0]

    s = s_ref[...].astype(jnp.bfloat16)
    # Fold b1 into layer 1: [action | 1] @ [[w1_a], [b1]].  The ones-column
    # concat is done in f32 (native 32-bit layout) before the bf16 pack.
    a_aug = jnp.concatenate(
        [a_ref[...], jnp.ones((tb, 1), jnp.float32)], axis=1
    ).astype(jnp.bfloat16)

    # Layer 1 -- fused concat + bias:
    #   concat([s, a], 1) @ w1 + b1 == s @ w1_s + [a|1] @ w1_ab
    # f32 MXU accumulation; on v7x the two dots accumulate in the MRB.
    h1 = (jnp.dot(s, w1s_ref[...], preferred_element_type=jnp.float32)
          + jnp.dot(a_aug, w1ab_ref[...], preferred_element_type=jnp.float32))

    if bf16_elementwise:
        # v6e / v7x: bf16 VALU -> ReLU / bias-add / layer-3 multiply on packed
        # bf16 vregs (roughly half the vector-op count of the f32 chain).
        h1 = jnp.maximum(h1.astype(jnp.bfloat16), jnp.bfloat16(0))
        h2 = jnp.dot(h1, w2_ref[...], preferred_element_type=jnp.float32)
        h2 = jnp.maximum(h2.astype(jnp.bfloat16)
                         + b2_ref[...].astype(jnp.bfloat16), jnp.bfloat16(0))
        prod = h2 * w3_ref[...].astype(jnp.bfloat16)
    else:
        # v5e: no bf16 VALU -> keep the elementwise chain in f32.
        h1 = jnp.maximum(h1, 0.0).astype(jnp.bfloat16)
        h2 = jnp.dot(h1, w2_ref[...], preferred_element_type=jnp.float32)
        h2 = jnp.maximum(h2 + b2_ref[...], 0.0)
        prod = h2 * w3_ref[...]

    # Layer 3 -- (H2, 1) matmul as VPU multiply + XLU lane reduction with f32
    # accumulation, stored as a lane-dense (1, tb) row.
    q = jnp.sum(prod, axis=-1, dtype=jnp.float32) + b3_ref[0, 0]      # (tb,)
    o_ref[...] = q.reshape(1, tb).astype(o_ref.dtype)


def _round_up(x, m):
    return ((x + m - 1) // m) * m


def _tpu_generation():
    """Returns (num_tensorcores_per_chip, bf16_valu_available)."""
    try:
        kind = jax.devices()[0].device_kind.lower()
    except Exception:
        kind = ""
    num_tc = 2 if "v7" in kind else 1
    bf16_valu = ("v6" in kind) or ("v7" in kind)
    return num_tc, bf16_valu


def critic_forward(state, action, params, *, max_batch_block=2048):
    """Pallas implementation of Critic.forward(state, action) -> (B, 1)."""
    w1_s, w1_ab, w2, b2, w3, b3 = params
    B, S = state.shape
    A = action.shape[1]
    H1 = w1_s.shape[1]
    H2 = w2.shape[1]

    num_tc, bf16_elem = _tpu_generation()

    # Generation-aware batch tiling:
    #  * v5e / v6e (1 TC): single grid step for realistic batches.
    #  * v7x (2 TCs): exactly one step per TensorCore via the "parallel" axis.
    #  * max_batch_block bounds per-step activation footprint (spill regime).
    tb = min(B, max_batch_block)
    if num_tc > 1:
        tb = min(tb, _round_up(pl.cdiv(B, num_tc), 128))
    if tb < B:
        tb = min(_round_up(tb, 128), B)    # lane-dense (1, tb) output blocks
    grid = (pl.cdiv(B, tb),)

    def batch_spec(feat):
        return pl.BlockSpec((tb, feat), lambda i: (i, 0))

    def weight_spec(arr):
        # Fully VMEM-resident; constant index_map -> no re-DMA across steps.
        return pl.BlockSpec(arr.shape, lambda i: (0, 0))

    params_bytes = sum(int(p.size) * p.dtype.itemsize
                       for p in (w1_s, w1_ab, w2, b2, w3, b3))
    cost = pl.CostEstimate(
        flops=2 * B * ((S + A + 1) * H1 + H1 * H2 + H2),
        transcendentals=0,
        bytes_accessed=int(state.size * state.dtype.itemsize
                           + action.size * action.dtype.itemsize
                           + params_bytes + B * 4),
    )

    out = pl.pallas_call(
        functools.partial(_critic_kernel, bf16_elementwise=bf16_elem),
        out_shape=jax.ShapeDtypeStruct((1, B), jnp.float32),   # lane-dense
        grid=grid,
        in_specs=[
            batch_spec(S),                                      # state
            batch_spec(A),                                      # action
            weight_spec(w1_s),                                  # w1 (state rows)
            weight_spec(w1_ab),                                 # w1 (action rows + b1)
            weight_spec(w2),
            weight_spec(b2),
            weight_spec(w3),                                    # (1, H2) row
            pl.BlockSpec(memory_space=pltpu.MemorySpace.SMEM),  # b3 scalar
        ],
        out_specs=pl.BlockSpec((1, tb), lambda i: (0, i)),
        compiler_params=pltpu.CompilerParams(
            dimension_semantics=("parallel",)),
        cost_estimate=cost,
    )(state, action, w1_s, w1_ab, w2, b2, w3, b3)

    # (1, B) -> (B, 1): identical flat order, free reshape in the wrapper.
    return out.reshape(B, 1)


def init_critic_params(key, state_dim, action_dim, hidden=256):
    """nn.Linear-style init, stored in the kernel's fused layout.

    * w1 is generated jointly for (state ++ action) then split so
      s @ w1_s + [a|1] @ w1_ab == concat([s, a], 1) @ w1 + b1 exactly
      (up to the bf16 cast).
    * b1 is folded into w1_ab as its last row.
    * Matmul weights are stored bf16 (MXU-native, halves weight DMA).
      TODO(synk): if this critic is trained, the bf16 copies must be
      re-derived from the f32 master weights every step.
    """
    d_in = state_dim + action_dim
    k1w, k1b, k2w, k2b, k3w, k3b = jax.random.split(key, 6)

    def unif(k, shape, fan_in):
        bound = 1.0 / jnp.sqrt(fan_in)
        return jax.random.uniform(k, shape, jnp.float32, -bound, bound)

    w1 = unif(k1w, (d_in, hidden), d_in)
    b1 = unif(k1b, (1, hidden), d_in)
    w2 = unif(k2w, (hidden, hidden), hidden)
    b2 = unif(k2b, (1, hidden), hidden)
    w3 = unif(k3w, (1, hidden), hidden)      # row-vector form of (hidden, 1)
    b3 = unif(k3b, (1, 1), hidden)

    w1_s = w1[:state_dim].astype(jnp.bfloat16)
    w1_ab = jnp.concatenate([w1[state_dim:], b1], axis=0).astype(jnp.bfloat16)
    return (w1_s, w1_ab, w2.astype(jnp.bfloat16), b2, w3, b3)


def _reference_forward(state, action, params):
    """Pure-JAX f32 reference matching the PyTorch forward."""
    w1_s, w1_ab, w2, b2, w3, b3 = params
    hp = jax.lax.Precision.HIGHEST
    w1 = jnp.concatenate([w1_s, w1_ab[:-1]], axis=0).astype(jnp.float32)
    b1 = w1_ab[-1:].astype(jnp.float32)
    x = jnp.concatenate([state, action], axis=1)
    x = jax.nn.relu(jnp.dot(x, w1, precision=hp) + b1)
    x = jax.nn.relu(jnp.dot(x, w2.astype(jnp.float32), precision=hp) + b2)
    return jnp.dot(x, w3.T, precision=hp) + b3


if __name__ == "__main__":
    key = jax.random.PRNGKey(0)
    state_dim, action_dim = 8, 4
    k_p, k_small, k_large = jax.random.split(key, 3)
    params = init_critic_params(k_p, state_dim, action_dim)

    # Small (inference-style) batch: single grid step, fully fused.
    k_s, k_a = jax.random.split(k_small)
    state = jax.random.normal(k_s, (2, state_dim), jnp.float32)
    action = jax.random.normal(k_a, (2, action_dim), jnp.float32)
    out = jax.block_until_ready(critic_forward(state, action, params))
    ref = _reference_forward(state, action, params)
    assert out.shape == (2, 1)
    assert jnp.allclose(out, ref, atol=2e-2, rtol=2e-2), \
        float(jnp.max(jnp.abs(out - ref)))

    # Larger (training-style) batch: 1 step on v5e/v6e, 2 steps on v7x.
    k_s, k_a = jax.random.split(k_large)
    state_l = jax.random.normal(k_s, (1024, state_dim), jnp.float32)
    action_l = jax.random.normal(k_a, (1024, action_dim), jnp.float32)
    out_l = jax.block_until_ready(critic_forward(state_l, action_l, params))
    ref_l = _reference_forward(state_l, action_l, params)
    assert out_l.shape == (1024, 1)
    assert jnp.allclose(out_l, ref_l, atol=2e-2, rtol=2e-2), \
        float(jnp.max(jnp.abs(out_l - ref_l)))

    print("KERNEL_OK")
</pallas_src>

<mosaic_0001>
module attributes {stable_mosaic.version = 11 : i64} {
  func.func @_critic_kernel(%arg0: i32, %arg1: memref<2x8xf32, #tpu.memory_space<vmem>>, %arg2: memref<2x4xf32, #tpu.memory_space<vmem>>, %arg3: memref<8x256xbf16, #tpu.memory_space<vmem>>, %arg4: memref<5x256xbf16, #tpu.memory_space<vmem>>, %arg5: memref<256x256xbf16, #tpu.memory_space<vmem>>, %arg6: memref<1x256xf32, #tpu.memory_space<vmem>>, %arg7: memref<1x256xf32, #tpu.memory_space<vmem>>, %arg8: memref<1x1xf32, #tpu.memory_space<smem>>, %arg9: memref<1x2xf32, #tpu.memory_space<vmem>>) attributes {dimension_semantics = [#tpu.dimension_semantics<parallel>], iteration_bounds = array<i64: 1>, scalar_prefetch = 0 : i64, scratch_operands = 0 : i64, tpu.core_type = #tpu.core_type<tc>, window_params = [{transform_indices = @transform_0, window_bounds = array<i64: 2, 8>}, {transform_indices = @transform_1, window_bounds = array<i64: 2, 4>}, {pipeline_mode = #tpu.pipeline_mode<synchronous>, transform_indices = @transform_2, window_bounds = array<i64: 8, 256>}, {pipeline_mode = #tpu.pipeline_mode<synchronous>, transform_indices = @transform_3, window_bounds = array<i64: 5, 256>}, {pipeline_mode = #tpu.pipeline_mode<synchronous>, transform_indices = @transform_4, window_bounds = array<i64: 256, 256>}, {pipeline_mode = #tpu.pipeline_mode<synchronous>, transform_indices = @transform_5, window_bounds = array<i64: 1, 256>}, {pipeline_mode = #tpu.pipeline_mode<synchronous>, transform_indices = @transform_6, window_bounds = array<i64: 1, 256>}, {transform_indices = @transform_7, window_bounds = array<i64: 1, 1>}, {transform_indices = @transform_8, window_bounds = array<i64: 1, 2>}]} {
    %c0 = arith.constant 0 : index
    %c0_0 = arith.constant 0 : index
    %0 = vector.load %arg1[%c0, %c0_0] : memref<2x8xf32, #tpu.memory_space<vmem>>, vector<2x8xf32>
    %1 = arith.truncf %0 : vector<2x8xf32> to vector<2x8xbf16>
    %c0_1 = arith.constant 0 : index
    %c0_2 = arith.constant 0 : index
    %2 = vector.load %arg2[%c0_1, %c0_2] : memref<2x4xf32, #tpu.memory_space<vmem>>, vector<2x4xf32>
    %cst = arith.constant 1.000000e+00 : f32
    %3 = vector.broadcast %cst : f32 to vector<2x1xf32>
    %4 = tpu.concatenate %2, %3 in 1 : vector<2x4xf32>, vector<2x1xf32> -> vector<2x5xf32>
    %5 = arith.truncf %4 : vector<2x5xf32> to vector<2x5xbf16>
    %c0_3 = arith.constant 0 : index
    %c0_4 = arith.constant 0 : index
    %6 = vector.load %arg3[%c0_3, %c0_4] : memref<8x256xbf16, #tpu.memory_space<vmem>>, vector<8x256xbf16>
    %cst_5 = arith.constant dense<0.000000e+00> : vector<2x256xf32>
    %7 = tpu.matmul %1, %6, %cst_5 {dimension_numbers = #tpu.dot_dimension_numbers<[1], [0], [0], [1], [0, 0, 1, 1], [], []>} : vector<2x8xbf16>, vector<8x256xbf16>, vector<2x256xf32> -> vector<2x256xf32>
    %c0_6 = arith.constant 0 : index
    %c0_7 = arith.constant 0 : index
    %8 = vector.load %arg4[%c0_6, %c0_7] : memref<5x256xbf16, #tpu.memory_space<vmem>>, vector<5x256xbf16>
    %cst_8 = arith.constant dense<0.000000e+00> : vector<2x256xf32>
    %9 = tpu.matmul %5, %8, %cst_8 {dimension_numbers = #tpu.dot_dimension_numbers<[1], [0], [0], [1], [0, 0, 1, 1], [], []>} : vector<2x5xbf16>, vector<5x256xbf16>, vector<2x256xf32> -> vector<2x256xf32>
    %10 = arith.addf %7, %9 : vector<2x256xf32>
    %cst_9 = arith.constant 0.000000e+00 : f32
    %11 = vector.broadcast %cst_9 : f32 to vector<2x256xf32>
    %12 = arith.maximumf %10, %11 : vector<2x256xf32>
    %13 = arith.truncf %12 : vector<2x256xf32> to vector<2x256xbf16>
    %c0_10 = arith.constant 0 : index
    %c0_11 = arith.constant 0 : index
    %14 = vector.load %arg5[%c0_10, %c0_11] : memref<256x256xbf16, #tpu.memory_space<vmem>>, vector<256x256xbf16>
    %cst_12 = arith.constant dense<0.000000e+00> : vector<2x256xf32>
    %15 = tpu.matmul %13, %14, %cst_12 {dimension_numbers = #tpu.dot_dimension_numbers<[1], [0], [0], [1], [0, 0, 1, 1], [], []>} : vector<2x256xbf16>, vector<256x256xbf16>, vector<2x256xf32> -> vector<2x256xf32>
    %c0_13 = arith.constant 0 : index
    %c0_14 = arith.constant 0 : index
    %16 = vector.load %arg6[%c0_13, %c0_14] : memref<1x256xf32, #tpu.memory_space<vmem>>, vector<1x256xf32>
    %17 = vector.broadcast %16 : vector<1x256xf32> to vector<2x256xf32>
    %18 = arith.addf %15, %17 : vector<2x256xf32>
    %cst_15 = arith.constant 0.000000e+00 : f32
    %19 = vector.broadcast %cst_15 : f32 to vector<2x256xf32>
    %20 = arith.maximumf %18, %19 : vector<2x256xf32>
    %c0_16 = arith.constant 0 : index
    %c0_17 = arith.constant 0 : index
    %21 = vector.load %arg7[%c0_16, %c0_17] : memref<1x256xf32, #tpu.memory_space<vmem>>, vector<1x256xf32>
    %22 = vector.broadcast %21 : vector<1x256xf32> to vector<2x256xf32>
    %23 = arith.mulf %20, %22 : vector<2x256xf32>
    %cst_18 = arith.constant dense<0.000000e+00> : vector<2xf32>
    %24 = vector.multi_reduction <add>, %23, %cst_18 [1] : vector<2x256xf32> to vector<2xf32>
    %c0_19 = arith.constant 0 : index
    %c0_20 = arith.constant 0 : index
    %25 = memref.load %arg8[%c0_19, %c0_20] : memref<1x1xf32, #tpu.memory_space<smem>>
    %26 = vector.broadcast %25 : f32 to vector<2xf32>
    %27 = arith.addf %24, %26 : vector<2xf32>
    %28 = vector.shape_cast %27 : vector<2xf32> to vector<1x2xf32>
    %c0_21 = arith.constant 0 : index
    %c0_22 = arith.constant 0 : index
    %29 = vector.load %arg9[%c0_21, %c0_22] : memref<1x2xf32, #tpu.memory_space<vmem>>, vector<1x2xf32>
    tpu.vector_store %arg9[%c0_21, %c0_22], %28 {strides = array<i32>} : memref<1x2xf32, #tpu.memory_space<vmem>>, vector<1x2xf32>,
    return
  }
  func.func @transform_0(%arg0: i32) -> (i32, i32) {
    %c0_i32 = arith.constant 0 : i32
    %c0_i32_0 = arith.constant 0 : i32
    return %arg0, %c0_i32 : i32, i32
  }
  func.func @transform_1(%arg0: i32) -> (i32, i32) {
    %c0_i32 = arith.constant 0 : i32
    %c0_i32_0 = arith.constant 0 : i32
    return %arg0, %c0_i32 : i32, i32
  }
  func.func @transform_2(%arg0: i32) -> (i32, i32) {
    %c0_i32 = arith.constant 0 : i32
    %c0_i32_0 = arith.constant 0 : i32
    %c0_i32_1 = arith.constant 0 : i32
    return %c0_i32, %c0_i32_0 : i32, i32
  }
  func.func @transform_3(%arg0: i32) -> (i32, i32) {
    %c0_i32 = arith.constant 0 : i32
    %c0_i32_0 = arith.constant 0 : i32
    %c0_i32_1 = arith.constant 0 : i32
    return %c0_i32, %c0_i32_0 : i32, i32
  }
  func.func @transform_4(%arg0: i32) -> (i32, i32) {
    %c0_i32 = arith.constant 0 : i32
    %c0_i32_0 = arith.constant 0 : i32
    %c0_i32_1 = arith.constant 0 : i32
    return %c0_i32, %c0_i32_0 : i32, i32
  }
  func.func @transform_5(%arg0: i32) -> (i32, i32) {
    %c0_i32 = arith.constant 0 : i32
    %c0_i32_0 = arith.constant 0 : i32
    %c0_i32_1 = arith.constant 0 : i32
    return %c0_i32, %c0_i32_0 : i32, i32
  }
  func.func @transform_6(%arg0: i32) -> (i32, i32) {
    %c0_i32 = arith.constant 0 : i32
    %c0_i32_0 = arith.constant 0 : i32
    %c0_i32_1 = arith.constant 0 : i32
    return %c0_i32, %c0_i32_0 : i32, i32
  }
  func.func @transform_7(%arg0: i32) -> (i32, i32) {
    %c0_i32 = arith.constant 0 : i32
    %c0_i32_0 = arith.constant 0 : i32
    %c0_i32_1 = arith.constant 0 : i32
    return %c0_i32, %c0_i32_0 : i32, i32
  }
  func.func @transform_8(%arg0: i32) -> (i32, i32) {
    %c0_i32 = arith.constant 0 : i32
    %c0_i32_0 = arith.constant 0 : i32
    return %c0_i32, %arg0 : i32, i32
  }
}

</mosaic_0001>

<llo_original>
// kernel: tpu_custom_call.1
$region0: #{tpu_custom_call.1}
  #allocation0 [shape = 'u32[]', space=smem, size = 0x4, offset = 0x4, fixed_abs, tag = 'smem constant byte address 0x4 - core index']
  #allocation1 [shape = 'u32[144,128]{1,0:T(1,128)}', space=vmem, size = 0x12000, scoped, tag = 'internal scratch']
  #allocation2 [shape = 'f32[1,1]{1,0:T(1,128)S(6)}', space=smem, size = 0x200, scoped, tag = 'scoped memory for tpu_custom_call.1']
  %s0 = inlined_call_operand.vmem [shape: f32[2,8], index: 0, kind: input, shape index: {}]
  %s1 = inlined_call_operand.hbm [shape: f32[2,4], index: 1, kind: input, shape index: {}]
  %s2 = inlined_call_operand.hbm [shape: bf16[8,256], index: 2, kind: input, shape index: {}]
  %s3 = inlined_call_operand.hbm [shape: bf16[5,256], index: 3, kind: input, shape index: {}]
  %s4 = inlined_call_operand.hbm [shape: bf16[256,256], index: 4, kind: input, shape index: {}]
  %s5 = inlined_call_operand.vmem [shape: f32[1,256], index: 5, kind: input, shape index: {}]
  %s6 = inlined_call_operand.vmem [shape: f32[1,256], index: 6, kind: input, shape index: {}]
  %s7 = inlined_call_operand.<no memory space> [shape: f32[1,1], index: 7, kind: input, shape index: {}]
  %s8 = inlined_call_operand.hbm [shape: f32[1,2], index: 8, kind: output, shape index: {}]
  %s9 = sld [smem:[#allocation0]]
  $region58: #{tpu_custom_call.1} parent=0
    _
  %s11 = ssub.s32 1, %s9
  %s12 = scalar_select 0, %s11, %s9
  %13 = sst [smem:[#allocation2]] %s7
  $region1: #{tpu_custom_call.1} parent=0
    #allocation3 [shape = 'u8[1024]{0}', space=vmem, size = 0x400, scoped, tag = 'input window, operand 1, single buffered']
    #allocation4 [shape = 's32[1]{0}', space=sflag, size = 0x4, scoped, tag = 'scoped memory for tpu_custom_call.1']
    #allocation5 [shape = 's32[1]{0}', space=sflag, size = 0x4, scoped, tag = 'scoped memory for tpu_custom_call.1']
    #allocation6 [shape = 'u8[4096]{0}', space=vmem, size = 0x1000, scoped, tag = 'input window, operand 2, single buffered']
    #allocation7 [shape = 's32[1]{0}', space=sflag, size = 0x4, scoped, tag = 'scoped memory for tpu_custom_call.1']
    #allocation8 [shape = 'u8[4096]{0}', space=vmem, size = 0x1000, scoped, tag = 'input window, operand 3, single buffered']
    #allocation9 [shape = 'u8[131072]{0}', space=vmem, size = 0x20000, scoped, tag = 'input window, operand 4, single buffered']
    #allocation10 [shape = 's32[1]{0}', space=sflag, size = 0x4, scoped, tag = 'scoped memory for tpu_custom_call.1']
    #allocation11 [shape = 'u8[512]{0}', space=vmem, size = 0x400, scoped, tag = 'output window, operand 0, single buffered']
    %14 = vsyncpa [#allocation4], 0
    %15 = vsyncpa [#allocation7], 0
    %16 = vsyncpa [#allocation10], 0
    %17 = vsyncpa [#allocation5], 0
    // Predicated region
    $region2: #{tpu_custom_call.1} parent=1 // pred_check
      _
    $region3: #{tpu_custom_call.1} parent=1 // pred_check_branch
      %19 = sbr.rel (0) target = $region5
    $region4: #{tpu_custom_call.1} parent=1 // pred_region
      _
    $region5: #{tpu_custom_call.1} parent=1 // pred_fallthru
      _
    // Predicated region
    $region6: #{tpu_custom_call.1} parent=1 // pred_check
      _
    $region7: #{tpu_custom_call.1} parent=1 // pred_check_branch
      %21 = sbr.rel (0) target = $region9
    $region8: #{tpu_custom_call.1} parent=1 // pred_region
      %s23 = ssub.s32 32, 32
      %24 = vsyncadd [#allocation4], %s23
      %s26 = sshll.u32 [#allocation3], 4
      %s27 = int_to_ptr.vmem [resolvable:$true] %s26
      %29 = dma.hbm_to_vmem [thread:$0]  %s1, 32, %s27, [#allocation4]
    $region9: #{tpu_custom_call.1} parent=1 // pred_fallthru
      _
    // Predicated region
    $region10: #{tpu_custom_call.1} parent=1 // pred_check
      _
    $region11: #{tpu_custom_call.1} parent=1 // pred_check_branch
      %31 = sbr.rel (0) target = $region13
    $region12: #{tpu_custom_call.1} parent=1 // pred_region
      %s33 = ssub.s32 128, 128
      %34 = vsyncadd [#allocation7], %s33
      %s36 = sshll.u32 [#allocation6], 4
      %s37 = int_to_ptr.vmem [resolvable:$true] %s36
      %39 = dma.hbm_to_vmem [thread:$0]  %s2, 128, %s37, [#allocation7]
    $region13: #{tpu_custom_call.1} parent=1 // pred_fallthru
      _
    // Predicated region
    $region14: #{tpu_custom_call.1} parent=1 // pred_check
      _
    $region15: #{tpu_custom_call.1} parent=1 // pred_check_branch
      %41 = sbr.rel (0) target = $region17
    $region16: #{tpu_custom_call.1} parent=1 // pred_region
      %s43 = ssub.s32 128, 128
      %44 = vsyncadd [#allocation7], %s43
      %s46 = sshll.u32 [#allocation8], 4
      %s47 = int_to_ptr.vmem [resolvable:$true] %s46
      %49 = dma.hbm_to_vmem [thread:$0]  %s3, 128, %s47, [#allocation7]
    $region17: #{tpu_custom_call.1} parent=1 // pred_fallthru
      _
    // Predicated region
    $region18: #{tpu_custom_call.1} parent=1 // pred_check
      _
    $region19: #{tpu_custom_call.1} parent=1 // pred_check_branch
      %51 = sbr.rel (0) target = $region21
    $region20: #{tpu_custom_call.1} parent=1 // pred_region
      %s53 = ssub.s32 4096, 4096
      %54 = vsyncadd [#allocation10], %s53
      %s55 = sshll.u32 [#allocation9], 4
      %s56 = int_to_ptr.vmem [resolvable:$true] %s55
      %61 = dma.hbm_to_vmem [thread:$0]  %s4, 4096, %s56, [#allocation10], 128, 128, 8
    $region21: #{tpu_custom_call.1} parent=1 // pred_fallthru
      _
    // Predicated region
    $region22: #{tpu_custom_call.1} parent=1 // pred_check
      _
    $region23: #{tpu_custom_call.1} parent=1 // pred_check_branch
      %63 = sbr.rel (0) target = $region25
    $region24: #{tpu_custom_call.1} parent=1 // pred_region
      _
    $region25: #{tpu_custom_call.1} parent=1 // pred_fallthru
      _
    // Predicated region
    $region26: #{tpu_custom_call.1} parent=1 // pred_check
      _
    $region27: #{tpu_custom_call.1} parent=1 // pred_check_branch
      %65 = sbr.rel (0) target = $region29
    $region28: #{tpu_custom_call.1} parent=1 // pred_region
      _
    $region29: #{tpu_custom_call.1} parent=1 // pred_fallthru
      _
    // Predicated region
    $region30: #{tpu_custom_call.1} parent=1 // pred_check
      _
    $region31: #{tpu_custom_call.1} parent=1 // pred_check_branch
      %67 = sbr.rel (0) target = $region33
    $region32: #{tpu_custom_call.1} parent=1 // pred_region
      _
    $region33: #{tpu_custom_call.1} parent=1 // pred_fallthru
      _
    // Predicated region
    $region34: #{tpu_custom_call.1} parent=1 // pred_check
      _
    $region35: #{tpu_custom_call.1} parent=1 // pred_check_branch
      %69 = sbr.rel (0) target = $region37
    $region36: #{tpu_custom_call.1} parent=1 // pred_region
      %70 = dma.done [#allocation4], 32
    $region37: #{tpu_custom_call.1} parent=1 // pred_fallthru
      _
    // Predicated region
    $region38: #{tpu_custom_call.1} parent=1 // pred_check
      _
    $region39: #{tpu_custom_call.1} parent=1 // pred_check_branch
      %72 = sbr.rel (0) target = $region41
    $region40: #{tpu_custom_call.1} parent=1 // pred_region
      %73 = dma.done [#allocation7], 128
    $region41: #{tpu_custom_call.1} parent=1 // pred_fallthru
      _
    // Predicated region
    $region42: #{tpu_custom_call.1} parent=1 // pred_check
      _
    $region43: #{tpu_custom_call.1} parent=1 // pred_check_branch
      %75 = sbr.rel (0) target = $region45
    $region44: #{tpu_custom_call.1} parent=1 // pred_region
      %76 = dma.done [#allocation7], 128
    $region45: #{tpu_custom_call.1} parent=1 // pred_fallthru
      _
    // Predicated region
    $region46: #{tpu_custom_call.1} parent=1 // pred_check
      _
    $region47: #{tpu_custom_call.1} parent=1 // pred_check_branch
      %78 = sbr.rel (0) target = $region49
    $region48: #{tpu_custom_call.1} parent=1 // pred_region
      %79 = dma.done [#allocation10], 4096
    $region49: #{tpu_custom_call.1} parent=1 // pred_fallthru
      _
    %v81 = vld [vmem:[%s0] sm:$0x3]
    %v82 = vpack.c.bf16 %v81, %v81
    %v83 = vld [vmem:[#allocation3] sm:$0x3]
    %vm84 = vcmask 31744
    %v85 = vsel %vm84, %v83, 1.0
    %v86 = vpack.c.bf16 %v85, %v85
    %v87 = vld [vmem:[#allocation6] sm:$0xff]
    %v88 = vld [vmem:[#allocation8] sm:$0x77]
    %v90 = vunpack.c.l.b16 %v88
    %v91 = vunpack.c.h.b16 %v88
    %v92 = vpack.c.b16 %v90, %v90
    %v93 = vpack.c.b16 %v91, %v91
    %vm94 = vcmask 39936
    %v96 = vsel %vm94, %v86, 0
    %vm98 = vcmask 1041408
    %vm99 = vcmask 1042432
    %v100 = vsel %vm98, 4294967295, 65535
    %v101 = vsel %vm99, %v100, 0
    %v103 = vand.u32 %v92, %v101
    %v106 = vand.u32 %v93, %v101
    %108 = vmatprep.subr.bf16.mxu0 0
    %109 = vmatpush1.bf16.msra.mxu0 0
    %110 = vmatprep.subr.bf16.mxu0 0
    %111 = vmatpush1.bf16.msra.mxu0 0
    %112 = vmatprep.subr.bf16.mxu0 0
    %113 = vmatpush1.bf16.msra.mxu0 0
    %114 = vmatprep.subr.bf16.mxu0 0
    %115 = vmatpush1.bf16.msra.mxu0 0
    %116 = vmatprep.subr.bf16.mxu0 0
    %117 = vmatpush1.bf16.msra.mxu0 0
    %118 = vmatprep.subr.bf16.mxu0 0
    %119 = vmatpush1.bf16.msra.mxu0 0
    %120 = vmatprep.subr.bf16.mxu0 0
    %121 = vmatpush1.bf16.msra.mxu0 0
    %122 = vmatprep.subr.bf16.mxu0 %v106
    %123 = vmatpush1.bf16.msra.mxu0 %v103
    %124 = vmatprep.subr.bf16.mxu0 0
    %125 = vmatpush2.bf16.msra.mxu0 0
    %126 = vmatprep.subr.bf16.mxu0 0
    %127 = vmatpush2.bf16.msra.mxu0 0
    %128 = vmatprep.subr.bf16.mxu0 0
    %129 = vmatpush2.bf16.msra.mxu0 0
    %130 = vmatprep.subr.bf16.mxu0 0
    %131 = vmatpush2.bf16.msra.mxu0 0
    %132 = vmatprep.subr.bf16.mxu0 0
    %133 = vmatpush2.bf16.msra.mxu0 0
    %134 = vmatprep.subr.bf16.mxu0 0
    %135 = vmatpush2.bf16.msra.mxu0 0
    %136 = vmatprep.subr.bf16.mxu0 0
    %137 = vmatpush2.bf16.msra.mxu0 0
    %138 = vmatprep.subr.bf16.mxu0 0
    %139 = vmatpush2.bf16.msra.mxu0 0
    %140 = vmatprep.mubr.bf16.mxu0 0
    %141 = vmatmul.mubr.bf16.gmra.mxu0 %v96
    %v142 = vpop.f32.mrf.mxu0
    %v143 = vadd.f32 0.0, %v142
    %v144 = vpop.f32.mrf.mxu0
    %v145 = vadd.f32 0.0, %v144
    %v146 = vpop.f32.mrf.mxu0
    %v147 = vpop.f32.mrf.mxu0
    %148 = vdwg.mxu0
    %v150 = vunpack.c.l.b16 %v87
    %v151 = vunpack.c.h.b16 %v87
    %v152 = vpack.c.b16 %v150, %v150
    %v153 = vpack.c.b16 %v151, %v151
    %vm154 = vcmask 64512
    %v156 = vsel %vm154, %v82, 0
    %vm158 = vcmask 1043456
    %v160 = vsel %vm158, %v152, 0
    %v163 = vsel %vm158, %v153, 0
    %165 = vmatprep.subr.bf16.mxu0 0
    %166 = vmatpush1.bf16.msra.mxu0 0
    %167 = vmatprep.subr.bf16.mxu0 0
    %168 = vmatpush1.bf16.msra.mxu0 0
    %169 = vmatprep.subr.bf16.mxu0 0
    %170 = vmatpush1.bf16.msra.mxu0 0
    %171 = vmatprep.subr.bf16.mxu0 0
    %172 = vmatpush1.bf16.msra.mxu0 0
    %173 = vmatprep.subr.bf16.mxu0 0
    %174 = vmatpush1.bf16.msra.mxu0 0
    %175 = vmatprep.subr.bf16.mxu0 0
    %176 = vmatpush1.bf16.msra.mxu0 0
    %177 = vmatprep.subr.bf16.mxu0 0
    %178 = vmatpush1.bf16.msra.mxu0 0
    %179 = vmatprep.subr.bf16.mxu0 %v163
    %180 = vmatpush1.bf16.msra.mxu0 %v160
    %181 = vmatprep.subr.bf16.mxu0 0
    %182 = vmatpush2.bf16.msra.mxu0 0
    %183 = vmatprep.subr.bf16.mxu0 0
    %184 = vmatpush2.bf16.msra.mxu0 0
    %185 = vmatprep.subr.bf16.mxu0 0
    %186 = vmatpush2.bf16.msra.mxu0 0
    %187 = vmatprep.subr.bf16.mxu0 0
    %188 = vmatpush2.bf16.msra.mxu0 0
    %189 = vmatprep.subr.bf16.mxu0 0
    %190 = vmatpush2.bf16.msra.mxu0 0
    %191 = vmatprep.subr.bf16.mxu0 0
    %192 = vmatpush2.bf16.msra.mxu0 0
    %193 = vmatprep.subr.bf16.mxu0 0
    %194 = vmatpush2.bf16.msra.mxu0 0
    %195 = vmatprep.subr.bf16.mxu0 0
    %196 = vmatpush2.bf16.msra.mxu0 0
    %197 = vmatprep.mubr.bf16.mxu0 0
    %198 = vmatmul.mubr.bf16.gmra.mxu0 %v156
    %v199 = vpop.f32.mrf.mxu0
    %v200 = vadd.f32 %v143, %v199
    %v201 = vpop.f32.mrf.mxu0
    %v202 = vadd.f32 %v145, %v201
    %v203 = vpop.f32.mrf.mxu0
    %v204 = vpop.f32.mrf.mxu0
    %205 = vdwg.mxu0
    %v206 = vmax.f32 %v200, 0.0
    %v207 = vmax.f32 %v202, 0.0
    %v208 = vpack.c.bf16 %v206, %v206
    %v209 = vpack.c.bf16 %v207, %v207
    %v210 = vld [vmem:[#allocation9] sm:$0xff]
    %v211 = vld [vmem:[#allocation9 + $0x8] sm:$0xff]
    %v212 = vld [vmem:[#allocation9 + $0x10] sm:$0xff]
    %v213 = vld [vmem:[#allocation9 + $0x18] sm:$0xff]
    %v214 = vld [vmem:[#allocation9 + $0x20] sm:$0xff]
    %v215 = vld [vmem:[#allocation9 + $0x28] sm:$0xff]
    %v216 = vld [vmem:[#allocation9 + $0x30] sm:$0xff]
    %v217 = vld [vmem:[#allocation9 + $0x38] sm:$0xff]
    %v218 = vld [vmem:[#allocation9 + $0x40] sm:$0xff]
    %v219 = vld [vmem:[#allocation9 + $0x48] sm:$0xff]
    %v220 = vld [vmem:[#allocation9 + $0x50] sm:$0xff]
    %v221 = vld [vmem:[#allocation9 + $0x58] sm:$0xff]
    %v222 = vld [vmem:[#allocation9 + $0x60] sm:$0xff]
    %v223 = vld [vmem:[#allocation9 + $0x68] sm:$0xff]
    %v224 = vld [vmem:[#allocation9 + $0x70] sm:$0xff]
    %v225 = vld [vmem:[#allocation9 + $0x78] sm:$0xff]
    %v226 = vld [vmem:[#allocation9 + $0x80] sm:$0xff]
    %v227 = vld [vmem:[#allocation9 + $0x88] sm:$0xff]
    %v228 = vld [vmem:[#allocation9 + $0x90] sm:$0xff]
    %v229 = vld [vmem:[#allocation9 + $0x98] sm:$0xff]
    %v230 = vld [vmem:[#allocation9 + $0xa0] sm:$0xff]
    %v231 = vld [vmem:[#allocation9 + $0xa8] sm:$0xff]
    %v232 = vld [vmem:[#allocation9 + $0xb0] sm:$0xff]
    %v233 = vld [vmem:[#allocation9 + $0xb8] sm:$0xff]
    %v234 = vld [vmem:[#allocation9 + $0xc0] sm:$0xff]
    %v235 = vld [vmem:[#allocation9 + $0xc8] sm:$0xff]
    %v236 = vld [vmem:[#allocation9 + $0xd0] sm:$0xff]
    %v237 = vld [vmem:[#allocation9 + $0xd8] sm:$0xff]
    %v238 = vld [vmem:[#allocation9 + $0xe0] sm:$0xff]
    %v239 = vld [vmem:[#allocation9 + $0xe8] sm:$0xff]
    %v240 = vld [vmem:[#allocation9 + $0xf0] sm:$0xff]
    %v241 = vld [vmem:[#allocation9 + $0xf8] sm:$0xff]
    %v242 = vld [vmem:[%s5] sm:$0x3]
    %v244 = vlaneseq
    %v245 = vshrl.u32 %v244, 7
    %v246 = vsub.s32 0, %v245
    %v247 = vrot.slane %v242, %v246
    %v248 = vlaneseq
    %v249 = vshrl.u32 %v248, 7
    %v250 = vsub.s32 1, %v249
    %v251 = vrot.slane %v242, %v250
    %v286 = vunpack.c.l.b16 %v210
    %v287 = vunpack.c.h.b16 %v210
    %v288 = vunpack.c.l.b16 %v211
    %v289 = vunpack.c.h.b16 %v211
    %v290 = vunpack.c.l.b16 %v212
    %v291 = vunpack.c.h.b16 %v212
    %v292 = vunpack.c.l.b16 %v213
    %v293 = vunpack.c.h.b16 %v213
    %v294 = vunpack.c.l.b16 %v214
    %v295 = vunpack.c.h.b16 %v214
    %v296 = vunpack.c.l.b16 %v215
    %v297 = vunpack.c.h.b16 %v215
    %v298 = vunpack.c.l.b16 %v216
    %v299 = vunpack.c.h.b16 %v216
    %v300 = vunpack.c.l.b16 %v217
    %v301 = vunpack.c.h.b16 %v217
    %v302 = vunpack.c.l.b16 %v218
    %v303 = vunpack.c.h.b16 %v218
    %v304 = vunpack.c.l.b16 %v219
    %v305 = vunpack.c.h.b16 %v219
    %v306 = vunpack.c.l.b16 %v220
    %v307 = vunpack.c.h.b16 %v220
    %v308 = vunpack.c.l.b16 %v221
    %v309 = vunpack.c.h.b16 %v221
    %v310 = vunpack.c.l.b16 %v222
    %v311 = vunpack.c.h.b16 %v222
    %v312 = vunpack.c.l.b16 %v223
    %v313 = vunpack.c.h.b16 %v223
    %v314 = vunpack.c.l.b16 %v224
    %v315 = vunpack.c.h.b16 %v224
    %v316 = vunpack.c.l.b16 %v225
    %v317 = vunpack.c.h.b16 %v225
    %v318 = vunpack.c.l.b16 %v226
    %v319 = vunpack.c.h.b16 %v226
    %v320 = vunpack.c.l.b16 %v227
    %v321 = vunpack.c.h.b16 %v227
    %v322 = vunpack.c.l.b16 %v228
    %v323 = vunpack.c.h.b16 %v228
    %v324 = vunpack.c.l.b16 %v229
    %v325 = vunpack.c.h.b16 %v229
    %v326 = vunpack.c.l.b16 %v230
    %v327 = vunpack.c.h.b16 %v230
    %v328 = vunpack.c.l.b16 %v231
    %v329 = vunpack.c.h.b16 %v231
    %v330 = vunpack.c.l.b16 %v232
    %v331 = vunpack.c.h.b16 %v232
    %v332 = vunpack.c.l.b16 %v233
    %v333 = vunpack.c.h.b16 %v233
    %v334 = vunpack.c.l.b16 %v234
    %v335 = vunpack.c.h.b16 %v234
    %v336 = vunpack.c.l.b16 %v235
    %v337 = vunpack.c.h.b16 %v235
    %v338 = vunpack.c.l.b16 %v236
    %v339 = vunpack.c.h.b16 %v236
    %v340 = vunpack.c.l.b16 %v237
    %v341 = vunpack.c.h.b16 %v237
    %v342 = vunpack.c.l.b16 %v238
    %v343 = vunpack.c.h.b16 %v238
    %v344 = vunpack.c.l.b16 %v239
    %v345 = vunpack.c.h.b16 %v239
    %v346 = vunpack.c.l.b16 %v240
    %v347 = vunpack.c.h.b16 %v240
    %v348 = vunpack.c.l.b16 %v241
    %v349 = vunpack.c.h.b16 %v241
    %v350 = vpack.c.b16 %v288, %v286
    %v351 = vpack.c.b16 %v289, %v287
    %v352 = vpack.c.b16 %v292, %v290
    %v353 = vpack.c.b16 %v293, %v291
    %v354 = vpack.c.b16 %v296, %v294
    %v355 = vpack.c.b16 %v297, %v295
    %v356 = vpack.c.b16 %v300, %v298
    %v357 = vpack.c.b16 %v301, %v299
    %v358 = vpack.c.b16 %v304, %v302
    %v359 = vpack.c.b16 %v305, %v303
    %v360 = vpack.c.b16 %v308, %v306
    %v361 = vpack.c.b16 %v309, %v307
    %v362 = vpack.c.b16 %v312, %v310
    %v363 = vpack.c.b16 %v313, %v311
    %v364 = vpack.c.b16 %v316, %v314
    %v365 = vpack.c.b16 %v317, %v315
    %v366 = vpack.c.b16 %v320, %v318
    %v367 = vpack.c.b16 %v321, %v319
    %v368 = vpack.c.b16 %v324, %v322
    %v369 = vpack.c.b16 %v325, %v323
    %v370 = vpack.c.b16 %v328, %v326
    %v371 = vpack.c.b16 %v329, %v327
    %v372 = vpack.c.b16 %v332, %v330
    %v373 = vpack.c.b16 %v333, %v331
    %v374 = vpack.c.b16 %v336, %v334
    %v375 = vpack.c.b16 %v337, %v335
    %v376 = vpack.c.b16 %v340, %v338
    %v377 = vpack.c.b16 %v341, %v339
    %v378 = vpack.c.b16 %v344, %v342
    %v379 = vpack.c.b16 %v345, %v343
    %v380 = vpack.c.b16 %v348, %v346
    %v381 = vpack.c.b16 %v349, %v347
    %414 = vmatprep.subr.bf16.mxu0 %v365
    %415 = vmatpush1.bf16.msra.mxu0 %v364
    %416 = vmatprep.subr.bf16.mxu0 %v363
    %417 = vmatpush1.bf16.msra.mxu0 %v362
    %418 = vmatprep.subr.bf16.mxu0 %v361
    %419 = vmatpush1.bf16.msra.mxu0 %v360
    %420 = vmatprep.subr.bf16.mxu0 %v359
    %421 = vmatpush1.bf16.msra.mxu0 %v358
    %422 = vmatprep.subr.bf16.mxu0 %v357
    %423 = vmatpush1.bf16.msra.mxu0 %v356
    %424 = vmatprep.subr.bf16.mxu0 %v355
    %425 = vmatpush1.bf16.msra.mxu0 %v354
    %426 = vmatprep.subr.bf16.mxu0 %v353
    %427 = vmatpush1.bf16.msra.mxu0 %v352
    %428 = vmatprep.subr.bf16.mxu0 %v351
    %429 = vmatpush1.bf16.msra.mxu0 %v350
    %430 = vmatprep.subr.bf16.mxu0 %v381
    %431 = vmatpush2.bf16.msra.mxu0 %v380
    %432 = vmatprep.subr.bf16.mxu0 %v379
    %433 = vmatpush2.bf16.msra.mxu0 %v378
    %434 = vmatprep.subr.bf16.mxu0 %v377
    %435 = vmatpush2.bf16.msra.mxu0 %v376
    %436 = vmatprep.subr.bf16.mxu0 %v375
    %437 = vmatpush2.bf16.msra.mxu0 %v374
    %438 = vmatprep.subr.bf16.mxu0 %v373
    %439 = vmatpush2.bf16.msra.mxu0 %v372
    %440 = vmatprep.subr.bf16.mxu0 %v371
    %441 = vmatpush2.bf16.msra.mxu0 %v370
    %442 = vmatprep.subr.bf16.mxu0 %v369
    %443 = vmatpush2.bf16.msra.mxu0 %v368
    %444 = vmatprep.subr.bf16.mxu0 %v367
    %445 = vmatpush2.bf16.msra.mxu0 %v366
    %446 = vmatprep.mubr.bf16.mxu0 %v209
    %447 = vmatmul.mubr.bf16.gmra.mxu0 %v208
    %v448 = vpop.f32.mrf.mxu0
    %v449 = vadd.f32 %v247, %v448
    %v450 = vpop.f32.mrf.mxu0
    %v451 = vadd.f32 %v251, %v450
    %v452 = vpop.f32.mrf.mxu0
    %v453 = vpop.f32.mrf.mxu0
    %454 = vdwg.mxu0
    %v455 = vmax.f32 %v449, 0.0
    %v456 = vmax.f32 %v451, 0.0
    %v457 = vld [vmem:[%s6] sm:$0x3]
    %v459 = vlaneseq
    %v460 = vshrl.u32 %v459, 7
    %v461 = vsub.s32 0, %v460
    %v462 = vrot.slane %v457, %v461
    %v463 = vlaneseq
    %v464 = vshrl.u32 %v463, 7
    %v465 = vsub.s32 1, %v464
    %v466 = vrot.slane %v457, %v465
    %v469 = vmul.f32 %v455, %v462
    %v470 = vmul.f32 %v456, %v466
    %v471 = vsel %vm98, %v469, 0.0
    %v472 = vsel %vm98, %v470, 0.0
    %v473 = vadd.f32 %v471, %v472
    %474 = vadd.xlane.f32.xlu0 %v473
    %v475 = vpop.xlane.xlu0 %474
    %s476 = sld [smem:[#allocation2]]
    %v477 = vstv %s476
    %v478 = vadd.f32 %v475, %v477
    %v480 = vlaneseq
    %v481 = vand.u32 %v480, 127
    %v482 = vlaneseq
    %v483 = vshrl.u32 %v482, 7
    %v484 = vsub.s32 %v481, %v483
    %v485 = vrot.slane %v478, %v484
    %vm487 = vcmask 8192
    %488 = vst.msk [vmem:[#allocation11] sm:$0x1] %vm487, %v485
    // Predicated region
    $region50: #{tpu_custom_call.1} parent=1 // pred_check
      _
    $region51: #{tpu_custom_call.1} parent=1 // pred_check_branch
      %490 = sbr.rel (0) target = $region53
    $region52: #{tpu_custom_call.1} parent=1 // pred_region
      %s492 = ssub.s32 16, 16
      %493 = vsyncadd [#allocation5], %s492
      %s495 = sshll.u32 [#allocation11], 4
      %s496 = int_to_ptr.vmem [resolvable:$true] %s495
      %498 = dma.vmem_to_hbm [thread:$0]  %s496, 16, %s8, [#allocation5]
    $region53: #{tpu_custom_call.1} parent=1 // pred_fallthru
      _
    // Predicated region
    $region54: #{tpu_custom_call.1} parent=1 // pred_check
      _
    $region55: #{tpu_custom_call.1} parent=1 // pred_check_branch
      %500 = sbr.rel (0) target = $region57
    $region56: #{tpu_custom_call.1} parent=1 // pred_region
      %501 = dma.done [#allocation5], 16
    $region57: #{tpu_custom_call.1} parent=1 // pred_fallthru
      _
    %502 = vsyncpa [#allocation4], 1
    %503 = vsyncpa [#allocation7], 1
    %504 = vsyncpa [#allocation10], 1
    %505 = vsyncpa [#allocation5], 1

</llo_original>
